<compile_context>
chip_gen: v5e
topology: v5e:2x2
jax: 0.10.0
libtpu: 0.0.40
codegen_flags: <defaults>
</compile_context>

<pallas_src>
import functools

import jax
import jax.numpy as jnp
from jax.experimental import pallas as pl
from jax.experimental.pallas import tpu as pltpu

_LANE = 128


def _round_up(x, m):
    return pl.cdiv(x, m) * m


def _text_mlp_kernel(*refs, n_extra):
    if n_extra > 0:
        x_ref, bias_ref, w1x_ref, wh_ref, wlast_ref, o_ref = refs
    else:
        x_ref, bias_ref, w1x_ref, wlast_ref, o_ref = refs
        wh_ref = None

    # Layer 1: x @ W1_x + bias(text), ReLU.  K is the true (unpadded) dim_in.
    h = jnp.dot(x_ref[...], w1x_ref[...], preferred_element_type=jnp.float32)
    h = jnp.maximum(h + bias_ref[...], 0.0)

    # Remaining hidden layers (static unroll; weights resident in VMEM).
    for l in range(n_extra):
        h = jnp.maximum(
            jnp.dot(h, wh_ref[l], preferred_element_type=jnp.float32), 0.0
        )

    # Output layer, identity output activation.  Narrow (dim_out-lane) store; the
    # masked vst cost is negligible vs the DMA saved by not padding the output.
    o_ref[...] = jnp.dot(
        h, wlast_ref[...], preferred_element_type=jnp.float32
    ).astype(o_ref.dtype)


def text_mlp_forward(x, text_emb, w_proj, w1, wh, w_last, *, tm=4096):
    """x: (N, dim_in) f32; text_emb: (1, text_dim_in) f32.
    w_proj: (text_dim_in, dim_in); w1: (2*dim_in, n_neurons);
    wh: (n_hidden_layers-1, n_neurons, n_neurons); w_last: (n_neurons, dim_out)."""
    n, dim_in = x.shape
    n_neurons = w1.shape[1]
    dim_out = w_last.shape[1]
    n_extra = int(wh.shape[0])

    x = x.astype(jnp.float32)

    # ---- fold the grid-invariant text path into a per-neuron bias -------------
    # concat([x, text]) @ w1 == x @ w1[:dim_in] + text @ w1[dim_in:]
    text = text_emb.astype(jnp.float32) @ w_proj.astype(jnp.float32)   # (1, dim_in)
    bias = text @ w1[dim_in:].astype(jnp.float32)                      # (1, n_neurons)
    w1_x = w1[:dim_in].astype(jnp.float32)                             # (dim_in, n_neurons)

    # ---- pad only the resident hidden width to 128 lanes (exact, weights tiny) --
    n_p = int(_round_up(n_neurons, _LANE))
    w1_x_p = jnp.pad(w1_x, ((0, 0), (0, n_p - n_neurons)))            # (dim_in, n_p)
    bias_p = jnp.pad(bias, ((0, 0), (0, n_p - n_neurons)))            # (1, n_p)
    w_last_p = jnp.pad(                                               # (n_p, dim_out)
        w_last.astype(jnp.float32), ((0, n_p - n_neurons), (0, 0))
    )

    # ---- row tile: large, but always >= 2 grid steps (v7x has 2 TensorCores) ---
    tm_eff = int(min(int(tm), _round_up(pl.cdiv(n, 2), 8)))
    tm_eff = max(8, int(_round_up(tm_eff, 8)))
    grid = (pl.cdiv(n, tm_eff),)   # ragged last block: Pallas masks the writeback

    in_specs = [
        pl.BlockSpec((tm_eff, dim_in), lambda i: (i, 0)),   # x: only per-step DMA in
        pl.BlockSpec((1, n_p), lambda i: (0, 0)),           # bias (resident)
        pl.BlockSpec((dim_in, n_p), lambda i: (0, 0)),      # W1_x (resident)
    ]
    args = [x, bias_p, w1_x_p]
    if n_extra > 0:
        wh_p = jnp.pad(
            wh.astype(jnp.float32),
            ((0, 0), (0, n_p - n_neurons), (0, n_p - n_neurons)),
        )
        in_specs.append(pl.BlockSpec((n_extra, n_p, n_p), lambda i: (0, 0, 0)))
        args.append(wh_p)
    in_specs.append(pl.BlockSpec((n_p, dim_out), lambda i: (0, 0)))   # W_last (resident)
    args.append(w_last_p)

    kernel = functools.partial(_text_mlp_kernel, n_extra=n_extra)

    return pl.pallas_call(
        kernel,
        out_shape=jax.ShapeDtypeStruct((n, dim_out), jnp.float32),
        grid_spec=pltpu.PrefetchScalarGridSpec(
            num_scalar_prefetch=0,
            grid=grid,
            in_specs=in_specs,
            out_specs=pl.BlockSpec((tm_eff, dim_out), lambda i: (i, 0)),
        ),
        compiler_params=pltpu.CompilerParams(
            dimension_semantics=("parallel",),
        ),
    )(*args)


def _reference(x, text_emb, w_proj, w1, wh, w_last):
    text = text_emb @ w_proj                      # (1, dim_in)
    text = jnp.broadcast_to(text, (x.shape[0], text.shape[1]))
    h = jnp.concatenate([x, text], axis=-1)
    h = jnp.maximum(h @ w1, 0.0)
    for l in range(wh.shape[0]):
        h = jnp.maximum(h @ wh[l], 0.0)
    return h @ w_last                             # identity output activation


if __name__ == "__main__":
    # Small config consistent with the module:
    #   dim_in=16, dim_out=8, text_dim_in=32, n_neurons=32, n_hidden_layers=2
    N = 300                      # not a multiple of the tile: exercises ragged path
    dim_in, dim_out = 16, 8
    text_dim_in = 32
    n_neurons = 32
    n_hidden_layers = 2

    key = jax.random.PRNGKey(0)
    k = jax.random.split(key, 6)
    x = jax.random.normal(k[0], (N, dim_in), dtype=jnp.float32)
    text_emb = jax.random.normal(k[1], (1, text_dim_in), dtype=jnp.float32)

    # Deterministic weight init (uniform, kaiming-like scale); stored as (in, out).
    def init_w(key, fan_in, fan_out):
        bound = 1.0 / jnp.sqrt(fan_in)
        return jax.random.uniform(
            key, (fan_in, fan_out), minval=-bound, maxval=bound, dtype=jnp.float32
        )

    w_proj = init_w(k[2], text_dim_in, dim_in)
    w1 = init_w(k[3], 2 * dim_in, n_neurons)
    wh = jnp.stack(
        [
            init_w(jax.random.fold_in(k[4], i), n_neurons, n_neurons)
            for i in range(n_hidden_layers - 1)
        ],
        axis=0,
    )
    w_last = init_w(k[5], n_neurons, dim_out)

    out = text_mlp_forward(x, text_emb, w_proj, w1, wh, w_last)
    out = jax.block_until_ready(out)

    ref = _reference(x, text_emb, w_proj, w1, wh, w_last)
    assert out.shape == (N, dim_out)
    assert jnp.allclose(out, ref, atol=1e-4, rtol=1e-4)
    print("KERNEL_OK")
</pallas_src>

<mosaic_0001>
module attributes {stable_mosaic.version = 11 : i64} {
  func.func @_text_mlp_kernel(%arg0: i32, %arg1: memref<152x16xf32, #tpu.memory_space<vmem>>, %arg2: memref<1x128xf32, #tpu.memory_space<vmem>>, %arg3: memref<16x128xf32, #tpu.memory_space<vmem>>, %arg4: memref<1x128x128xf32, #tpu.memory_space<vmem>>, %arg5: memref<128x8xf32, #tpu.memory_space<vmem>>, %arg6: memref<152x8xf32, #tpu.memory_space<vmem>>) attributes {dimension_semantics = [#tpu.dimension_semantics<parallel>], iteration_bounds = array<i64: 2>, scalar_prefetch = 0 : i64, scratch_operands = 0 : i64, tpu.core_type = #tpu.core_type<tc>, window_params = [{transform_indices = @transform_0, window_bounds = array<i64: 152, 16>}, {pipeline_mode = #tpu.pipeline_mode<synchronous>, transform_indices = @transform_1, window_bounds = array<i64: 1, 128>}, {pipeline_mode = #tpu.pipeline_mode<synchronous>, transform_indices = @transform_2, window_bounds = array<i64: 16, 128>}, {pipeline_mode = #tpu.pipeline_mode<synchronous>, transform_indices = @transform_3, window_bounds = array<i64: 1, 128, 128>}, {pipeline_mode = #tpu.pipeline_mode<synchronous>, transform_indices = @transform_4, window_bounds = array<i64: 128, 8>}, {transform_indices = @transform_5, window_bounds = array<i64: 152, 8>}]} {
    %c0 = arith.constant 0 : index
    %c0_0 = arith.constant 0 : index
    %0 = vector.load %arg1[%c0, %c0_0] : memref<152x16xf32, #tpu.memory_space<vmem>>, vector<152x16xf32>
    %c0_1 = arith.constant 0 : index
    %c0_2 = arith.constant 0 : index
    %1 = vector.load %arg3[%c0_1, %c0_2] : memref<16x128xf32, #tpu.memory_space<vmem>>, vector<16x128xf32>
    %cst = arith.constant dense<0.000000e+00> : vector<152x128xf32>
    %2 = tpu.matmul %0, %1, %cst {dimension_numbers = #tpu.dot_dimension_numbers<[1], [0], [0], [1], [0, 0, 1, 1], [], []>} : vector<152x16xf32>, vector<16x128xf32>, vector<152x128xf32> -> vector<152x128xf32>
    %c0_3 = arith.constant 0 : index
    %c0_4 = arith.constant 0 : index
    %3 = vector.load %arg2[%c0_3, %c0_4] : memref<1x128xf32, #tpu.memory_space<vmem>>, vector<1x128xf32>
    %4 = vector.broadcast %3 : vector<1x128xf32> to vector<152x128xf32>
    %5 = arith.addf %2, %4 : vector<152x128xf32>
    %cst_5 = arith.constant 0.000000e+00 : f32
    %6 = vector.broadcast %cst_5 : f32 to vector<152x128xf32>
    %7 = arith.maximumf %5, %6 : vector<152x128xf32>
    %c0_6 = arith.constant 0 : index
    %c0_7 = arith.constant 0 : index
    %c0_8 = arith.constant 0 : index
    %8 = vector.load %arg4[%c0_6, %c0_7, %c0_8] : memref<1x128x128xf32, #tpu.memory_space<vmem>>, vector<1x128x128xf32>
    %9 = vector.shape_cast %8 : vector<1x128x128xf32> to vector<128x128xf32>
    %cst_9 = arith.constant dense<0.000000e+00> : vector<152x128xf32>
    %10 = tpu.matmul %7, %9, %cst_9 {dimension_numbers = #tpu.dot_dimension_numbers<[1], [0], [0], [1], [0, 0, 1, 1], [], []>} : vector<152x128xf32>, vector<128x128xf32>, vector<152x128xf32> -> vector<152x128xf32>
    %cst_10 = arith.constant 0.000000e+00 : f32
    %11 = vector.broadcast %cst_10 : f32 to vector<152x128xf32>
    %12 = arith.maximumf %10, %11 : vector<152x128xf32>
    %c0_11 = arith.constant 0 : index
    %c0_12 = arith.constant 0 : index
    %13 = vector.load %arg5[%c0_11, %c0_12] : memref<128x8xf32, #tpu.memory_space<vmem>>, vector<128x8xf32>
    %cst_13 = arith.constant dense<0.000000e+00> : vector<152x8xf32>
    %14 = tpu.matmul %12, %13, %cst_13 {dimension_numbers = #tpu.dot_dimension_numbers<[1], [0], [0], [1], [0, 0, 1, 1], [], []>} : vector<152x128xf32>, vector<128x8xf32>, vector<152x8xf32> -> vector<152x8xf32>
    %c0_14 = arith.constant 0 : index
    %c0_15 = arith.constant 0 : index
    %15 = vector.load %arg6[%c0_14, %c0_15] : memref<152x8xf32, #tpu.memory_space<vmem>>, vector<152x8xf32>
    tpu.vector_store %arg6[%c0_14, %c0_15], %14 {strides = array<i32>} : memref<152x8xf32, #tpu.memory_space<vmem>>, vector<152x8xf32>,
    return
  }
  func.func @transform_0(%arg0: i32) -> (i32, i32) {
    %c0_i32 = arith.constant 0 : i32
    %c0_i32_0 = arith.constant 0 : i32
    return %arg0, %c0_i32 : i32, i32
  }
  func.func @transform_1(%arg0: i32) -> (i32, i32) {
    %c0_i32 = arith.constant 0 : i32
    %c0_i32_0 = arith.constant 0 : i32
    %c0_i32_1 = arith.constant 0 : i32
    return %c0_i32, %c0_i32_0 : i32, i32
  }
  func.func @transform_2(%arg0: i32) -> (i32, i32) {
    %c0_i32 = arith.constant 0 : i32
    %c0_i32_0 = arith.constant 0 : i32
    %c0_i32_1 = arith.constant 0 : i32
    return %c0_i32, %c0_i32_0 : i32, i32
  }
  func.func @transform_3(%arg0: i32) -> (i32, i32, i32) {
    %c0_i32 = arith.constant 0 : i32
    %c0_i32_0 = arith.constant 0 : i32
    %c0_i32_1 = arith.constant 0 : i32
    %c0_i32_2 = arith.constant 0 : i32
    return %c0_i32, %c0_i32_0, %c0_i32_1 : i32, i32, i32
  }
  func.func @transform_4(%arg0: i32) -> (i32, i32) {
    %c0_i32 = arith.constant 0 : i32
    %c0_i32_0 = arith.constant 0 : i32
    %c0_i32_1 = arith.constant 0 : i32
    return %c0_i32, %c0_i32_0 : i32, i32
  }
  func.func @transform_5(%arg0: i32) -> (i32, i32) {
    %c0_i32 = arith.constant 0 : i32
    %c0_i32_0 = arith.constant 0 : i32
    return %arg0, %c0_i32 : i32, i32
  }
}

</mosaic_0001>

<llo_original>
// kernel: tpu_custom_call.1
$region0: #{tpu_custom_call.1}
  #allocation0 [shape = 'u32[]', space=smem, size = 0x4, offset = 0x4, fixed_abs, tag = 'smem constant byte address 0x4 - core index']
  #allocation1 [shape = 'u32[72,128]{1,0:T(1,128)}', space=vmem, size = 0x9000, scoped, tag = 'internal scratch']
  %s0 = inlined_call_operand.vmem [shape: f32[300,16], index: 0, kind: input, shape index: {}]
  %s1 = inlined_call_operand.vmem [shape: f32[1,128], index: 1, kind: input, shape index: {}]
  %s2 = inlined_call_operand.vmem [shape: f32[16,128], index: 2, kind: input, shape index: {}]
  %s3 = inlined_call_operand.vmem [shape: f32[1,128,128], index: 3, kind: input, shape index: {}]
  %s4 = inlined_call_operand.vmem [shape: f32[128,8], index: 4, kind: input, shape index: {}]
  %s5 = inlined_call_operand.vmem [shape: f32[300,8], index: 5, kind: output, shape index: {}]
  %s6 = sld [smem:[#allocation0]]
  $region53: #{tpu_custom_call.1} parent=0
    _
  %s8 = ssub.s32 1, %s6
  %s9 = scalar_select 0, %s8, %s6
  loop: start=0, step=1, limit=4
  $region2: #{tpu_custom_call.1} parent=0 // loop_pre_header
    _
  $region3: #{tpu_custom_call.1} parent=0 // loop_header
    %s11 = sphi 0, %s15
    %p12 = scmp.ge.s32.totalorder %s11, 4
    %s21 = sphi 0, %s23
    %s24 = sphi 0, %s21
    %s25 = sphi 0, %s24
    %s41 = sphi 0, %s25
    %s45 = sphi 0, %s45
    %s47 = sphi 0, %s45
    %s48 = sphi 0, %s47
    %s62 = sphi 0, %s48
    %s66 = sphi 0, %s66
    %s68 = sphi 0, %s66
    %s69 = sphi 0, %s68
    %s83 = sphi 0, %s69
    %s87 = sphi 0, %s87
    %s89 = sphi 0, %s87
    %s90 = sphi 0, %s89
    %s104 = sphi 0, %s90
    %s108 = sphi 0, %s108
    %s110 = sphi 0, %s108
    %s111 = sphi 0, %s110
    %s125 = sphi 0, %s111
    %s131 = sphi 0, %s133
    %s134 = sphi 0, %s131
    %s135 = sphi 0, %s134
    %s151 = sphi 0, %s135
  $region4: #{tpu_custom_call.1} parent=0 // loop_header_branch
    %14 = sbr.rel (%p12) target = $region8
  $region5: #{tpu_custom_call.1} parent=0 // loop_body
    %s16 = ssub.s32 %s11, 1
    %s17 = ssub.s32 %s11, 2
    %s18 = sadd.s32 %s11, 1
    %s19 = ssub.s32 %s11, %s18
    %p20 = scmp.eq.s32.totalorder %s19, 0
    %s22 = sadd.s32 %s21, 1
    %s23 = scalar_select %p20, %s21, %s22
    %p26 = pneg %p20
    %p27 = scmp.eq.s32.totalorder %s11, 1
    %p28 = por %p26, %p27
    %p29 = scmp.ne.s32.totalorder %s21, %s24
    %p30 = scmp.eq.s32.totalorder %s11, 0
    %p31 = por %p29, %p30
    %p32 = scmp.ne.s32.totalorder %s21, %s24
    %p33 = scmp.eq.s32.totalorder %s16, 1
    %p34 = por %p32, %p33
    %p35 = scmp.ne.s32.totalorder %s24, %s25
    %p36 = scmp.eq.s32.totalorder %s16, 0
    %p37 = por %p35, %p36
    %p38 = scmp.ne.s32.totalorder %s24, %s25
    %p39 = scmp.eq.s32.totalorder %s17, 1
    %p40 = por %p38, %p39
    %p42 = scmp.ne.s32.totalorder %s25, %s41
    %p43 = scmp.eq.s32.totalorder %s17, 0
    %p44 = por %p42, %p43
    %s46 = sadd.s32 %s45, 1
    %p49 = scmp.eq.s32.totalorder %s11, 1
    %p50 = scmp.ne.s32.totalorder %s45, %s47
    %p51 = scmp.eq.s32.totalorder %s11, 0
    %p52 = por %p50, %p51
    %p53 = scmp.ne.s32.totalorder %s45, %s47
    %p54 = scmp.eq.s32.totalorder %s16, 1
    %p55 = por %p53, %p54
    %p56 = scmp.ne.s32.totalorder %s47, %s48
    %p57 = scmp.eq.s32.totalorder %s16, 0
    %p58 = por %p56, %p57
    %p59 = scmp.ne.s32.totalorder %s47, %s48
    %p60 = scmp.eq.s32.totalorder %s17, 1
    %p61 = por %p59, %p60
    %p63 = scmp.ne.s32.totalorder %s48, %s62
    %p64 = scmp.eq.s32.totalorder %s17, 0
    %p65 = por %p63, %p64
    %s67 = sadd.s32 %s66, 1
    %p70 = scmp.eq.s32.totalorder %s11, 1
    %p71 = scmp.ne.s32.totalorder %s66, %s68
    %p72 = scmp.eq.s32.totalorder %s11, 0
    %p73 = por %p71, %p72
    %p74 = scmp.ne.s32.totalorder %s66, %s68
    %p75 = scmp.eq.s32.totalorder %s16, 1
    %p76 = por %p74, %p75
    %p77 = scmp.ne.s32.totalorder %s68, %s69
    %p78 = scmp.eq.s32.totalorder %s16, 0
    %p79 = por %p77, %p78
    %p80 = scmp.ne.s32.totalorder %s68, %s69
    %p81 = scmp.eq.s32.totalorder %s17, 1
    %p82 = por %p80, %p81
    %p84 = scmp.ne.s32.totalorder %s69, %s83
    %p85 = scmp.eq.s32.totalorder %s17, 0
    %p86 = por %p84, %p85
    %s88 = sadd.s32 %s87, 1
    %p91 = scmp.eq.s32.totalorder %s11, 1
    %p92 = scmp.ne.s32.totalorder %s87, %s89
    %p93 = scmp.eq.s32.totalorder %s11, 0
    %p94 = por %p92, %p93
    %p95 = scmp.ne.s32.totalorder %s87, %s89
    %p96 = scmp.eq.s32.totalorder %s16, 1
    %p97 = por %p95, %p96
    %p98 = scmp.ne.s32.totalorder %s89, %s90
    %p99 = scmp.eq.s32.totalorder %s16, 0
    %p100 = por %p98, %p99
    %p101 = scmp.ne.s32.totalorder %s89, %s90
    %p102 = scmp.eq.s32.totalorder %s17, 1
    %p103 = por %p101, %p102
    %p105 = scmp.ne.s32.totalorder %s90, %s104
    %p106 = scmp.eq.s32.totalorder %s17, 0
    %p107 = por %p105, %p106
    %s109 = sadd.s32 %s108, 1
    %p112 = scmp.eq.s32.totalorder %s11, 1
    %p113 = scmp.ne.s32.totalorder %s108, %s110
    %p114 = scmp.eq.s32.totalorder %s11, 0
    %p115 = por %p113, %p114
    %p116 = scmp.ne.s32.totalorder %s108, %s110
    %p117 = scmp.eq.s32.totalorder %s16, 1
    %p118 = por %p116, %p117
    %p119 = scmp.ne.s32.totalorder %s110, %s111
    %p120 = scmp.eq.s32.totalorder %s16, 0
    %p121 = por %p119, %p120
    %p122 = scmp.ne.s32.totalorder %s110, %s111
    %p123 = scmp.eq.s32.totalorder %s17, 1
    %p124 = por %p122, %p123
    %p126 = scmp.ne.s32.totalorder %s111, %s125
    %p127 = scmp.eq.s32.totalorder %s17, 0
    %p128 = por %p126, %p127
    %s129 = ssub.s32 %s11, %s18
    %p130 = scmp.eq.s32.totalorder %s129, 0
    %s132 = sadd.s32 %s131, 1
    %s133 = scalar_select %p130, %s131, %s132
    %p136 = pneg %p130
    %p137 = scmp.eq.s32.totalorder %s11, 1
    %p138 = por %p136, %p137
    %p139 = scmp.ne.s32.totalorder %s131, %s134
    %p140 = scmp.eq.s32.totalorder %s11, 0
    %p141 = por %p139, %p140
    %p142 = scmp.ne.s32.totalorder %s131, %s134
    %p143 = scmp.eq.s32.totalorder %s16, 1
    %p144 = por %p142, %p143
    %p145 = scmp.ne.s32.totalorder %s134, %s135
    %p146 = scmp.eq.s32.totalorder %s16, 0
    %p147 = por %p145, %p146
    %p148 = scmp.ne.s32.totalorder %s134, %s135
    %p149 = scmp.eq.s32.totalorder %s17, 1
    %p150 = por %p148, %p149
    %p152 = scmp.ne.s32.totalorder %s135, %s151
    %p153 = scmp.eq.s32.totalorder %s17, 0
    %p154 = por %p152, %p153
    %p155 = scmp.le.s32.totalorder 1, %s11
    %p156 = scmp.lt.s32.totalorder %s11, 3
    %p157 = pnand %p155, %p156
    %p158 = pneg %p157
    // Predicated region
    $region9: #{tpu_custom_call.1} parent=5 // pred_check
      _
    $region10: #{tpu_custom_call.1} parent=5 // pred_check_branch
      %160 = sbr.rel (%p157) target = $region12
    $region11: #{tpu_custom_call.1} parent=5 // pred_region
      %s161 = ssub.s32 %s11, 1
      // Predicated region
      $region13: #{tpu_custom_call.1} parent=11 // pred_check
        %p162 = pneg %p58
      $region14: #{tpu_custom_call.1} parent=11 // pred_check_branch
        %164 = sbr.rel (%p162) target = $region16
      $region15: #{tpu_custom_call.1} parent=11 // pred_region
        _
      $region16: #{tpu_custom_call.1} parent=11 // pred_fallthru
        _
      // Predicated region
      $region17: #{tpu_custom_call.1} parent=11 // pred_check
        %p165 = pneg %p79
      $region18: #{tpu_custom_call.1} parent=11 // pred_check_branch
        %167 = sbr.rel (%p165) target = $region20
      $region19: #{tpu_custom_call.1} parent=11 // pred_region
        _
      $region20: #{tpu_custom_call.1} parent=11 // pred_fallthru
        _
      // Predicated region
      $region21: #{tpu_custom_call.1} parent=11 // pred_check
        %p168 = pneg %p100
      $region22: #{tpu_custom_call.1} parent=11 // pred_check_branch
        %170 = sbr.rel (%p168) target = $region24
      $region23: #{tpu_custom_call.1} parent=11 // pred_region
        _
      $region24: #{tpu_custom_call.1} parent=11 // pred_fallthru
        _
      // Predicated region
      $region25: #{tpu_custom_call.1} parent=11 // pred_check
        %p171 = pneg %p121
      $region26: #{tpu_custom_call.1} parent=11 // pred_check_branch
        %173 = sbr.rel (%p171) target = $region28
      $region27: #{tpu_custom_call.1} parent=11 // pred_region
        _
      $region28: #{tpu_custom_call.1} parent=11 // pred_fallthru
        _
    $region12: #{tpu_custom_call.1} parent=5 // pred_fallthru
      _
    %p174 = scmp.lt.s32.totalorder %s11, 2
    // Predicated region
    $region29: #{tpu_custom_call.1} parent=5 // pred_check
      %p175 = pneg %p174
    $region30: #{tpu_custom_call.1} parent=5 // pred_check_branch
      %177 = sbr.rel (%p175) target = $region32
    $region31: #{tpu_custom_call.1} parent=5 // pred_region
      // Predicated region
      $region33: #{tpu_custom_call.1} parent=31 // pred_check
        %p178 = pneg %p31
      $region34: #{tpu_custom_call.1} parent=31 // pred_check_branch
        %180 = sbr.rel (%p178) target = $region36
      $region35: #{tpu_custom_call.1} parent=31 // pred_region
        %s181 = smul.u32 19, %s11
        %p182 = scmp.lt.s32.totalorder %s181, 37
        %s183 = scalar_select %p182, %s181, 37
        %s184 = smul.addr %s183, 8
        %s185 = scalar_lea.vmem %s0, %s184
        %s186 = smul.u32 19, %s11
      $region36: #{tpu_custom_call.1} parent=31 // pred_fallthru
        _
    $region32: #{tpu_custom_call.1} parent=5 // pred_fallthru
      _
    %p187 = scmp.le.s32.totalorder 1, %s11
    %p188 = scmp.lt.s32.totalorder %s11, 3
    %p189 = pnand %p187, %p188
    %p190 = pneg %p189
    // Predicated region
    $region37: #{tpu_custom_call.1} parent=5 // pred_check
      _
    $region38: #{tpu_custom_call.1} parent=5 // pred_check_branch
      %192 = sbr.rel (%p189) target = $region40
    $region39: #{tpu_custom_call.1} parent=5 // pred_region
      %s193 = ssub.s32 %s11, 1
      %s194 = smul.u32 19, %s16
      %p195 = scmp.lt.s32.totalorder %s194, 37
      %s196 = scalar_select %p195, %s194, 37
      %s197 = smul.addr %s196, 8
      %s198 = scalar_lea.vmem %s0, %s197
      %p199 = pneg %p37
      %p200 = pneg %p34
      %p201 = pneg %p58
      %p202 = pneg %p55
      %p203 = pneg %p79
      %p204 = pneg %p76
      %p205 = pneg %p100
      %p206 = pneg %p97
      %p207 = pneg %p121
      %p208 = pneg %p118
      %p209 = pneg %p147
      %p210 = pneg %p144
      %s211 = smul.u32 19, %s16
      %p212 = scmp.lt.s32.totalorder %s211, 37
      %s213 = scalar_select %p212, %s211, 37
      %s214 = smul.addr %s213, 8
      %s215 = scalar_lea.vmem %s5, %s214
      %s216 = smul.u32 19, %s16
      %p217 = scmp.lt.s32.totalorder %s216, 37
      %s218 = scalar_select %p217, %s216, 37
      %s219 = smul.addr %s218, 8
      %s220 = scalar_lea.vmem %s0, %s219
      %s221 = smul.u32 19, %s16
      %s222 = smul.u32 19, %s16
      %p223 = scmp.lt.s32.totalorder %s222, 37
      %s224 = scalar_select %p223, %s222, 37
      %s225 = smul.addr %s224, 8
      %s226 = scalar_lea.vmem %s5, %s225
      %s227 = smul.u32 19, %s16
      %v228 = vld [vmem:[%s220] sm:$0xff]
      %v229 = vld [vmem:[%s220 + $0x8] sm:$0xff]
      %v230 = vld [vmem:[%s220 + $0x10] sm:$0xff]
      %v231 = vld [vmem:[%s220 + $0x18] sm:$0xff]
      %v232 = vld [vmem:[%s220 + $0x20] sm:$0xff]
      %v233 = vld [vmem:[%s220 + $0x28] sm:$0xff]
      %v234 = vld [vmem:[%s220 + $0x30] sm:$0xff]
      %v235 = vld [vmem:[%s220 + $0x38] sm:$0xff]
      %v236 = vld [vmem:[%s220 + $0x40] sm:$0xff]
      %v237 = vld [vmem:[%s220 + $0x48] sm:$0xff]
      %v238 = vld [vmem:[%s220 + $0x50] sm:$0xff]
      %v239 = vld [vmem:[%s220 + $0x58] sm:$0xff]
      %v240 = vld [vmem:[%s220 + $0x60] sm:$0xff]
      %v241 = vld [vmem:[%s220 + $0x68] sm:$0xff]
      %v242 = vld [vmem:[%s220 + $0x70] sm:$0xff]
      %v243 = vld [vmem:[%s220 + $0x78] sm:$0xff]
      %v244 = vld [vmem:[%s220 + $0x80] sm:$0xff]
      %v245 = vld [vmem:[%s220 + $0x88] sm:$0xff]
      %v246 = vld [vmem:[%s220 + $0x90] sm:$0xff]
      %v247 = vld [vmem:[%s2] sm:$0xff]
      %v248 = vld [vmem:[%s2 + $0x8] sm:$0xff]
      %v249 = vld [vmem:[%s1] sm:$0x1]
      %v251 = vperm.slane %v249, 0
      %vm253 = vcmask 130048
      %v255 = vsel %vm253, %v228, 0
      %v258 = vsel %vm253, %v229, 0
      %v261 = vsel %vm253, %v230, 0
      %v264 = vsel %vm253, %v231, 0
      %v267 = vsel %vm253, %v232, 0
      %v270 = vsel %vm253, %v233, 0
      %v273 = vsel %vm253, %v234, 0
      %v276 = vsel %vm253, %v235, 0
      %v279 = vsel %vm253, %v236, 0
      %v282 = vsel %vm253, %v237, 0
      %v285 = vsel %vm253, %v238, 0
      %v288 = vsel %vm253, %v239, 0
      %v291 = vsel %vm253, %v240, 0
      %v294 = vsel %vm253, %v241, 0
      %v297 = vsel %vm253, %v242, 0
      %v300 = vsel %vm253, %v243, 0
      %v303 = vsel %vm253, %v244, 0
      %v306 = vsel %vm253, %v245, 0
      %v309 = vsel %vm253, %v246, 0
      %311 = vmatpush.msra.mxu0 0.0
      %312 = vmatpush.msra.mxu0 0.0
      %313 = vmatpush.msra.mxu0 0.0
      %314 = vmatpush.msra.mxu0 0.0
      %315 = vmatpush.msra.mxu0 0.0
      %316 = vmatpush.msra.mxu0 0.0
      %317 = vmatpush.msra.mxu0 0.0
      %318 = vmatpush.msra.mxu0 0.0
      %319 = vmatpush.msra.mxu0 0.0
      %320 = vmatpush.msra.mxu0 0.0
      %321 = vmatpush.msra.mxu0 0.0
      %322 = vmatpush.msra.mxu0 0.0
      %323 = vmatpush.msra.mxu0 0.0
      %324 = vmatpush.msra.mxu0 0.0
      %325 = vmatpush.msra.mxu0 %v248
      %326 = vmatpush.msra.mxu0 %v247
      %327 = vmatmul.f32.gmra.mxu0 %v255
      %v328 = vpop.f32.mrf.mxu0
      %v329 = vadd.f32 %v251, %v328
      %330 = vmatmul.f32.gmra.mxu0 %v258
      %v331 = vpop.f32.mrf.mxu0
      %v332 = vadd.f32 %v251, %v331
      %333 = vmatmul.f32.gmra.mxu0 %v261
      %v334 = vpop.f32.mrf.mxu0
      %v335 = vadd.f32 %v251, %v334
      %336 = vmatmul.f32.gmra.mxu0 %v264
      %v337 = vpop.f32.mrf.mxu0
      %v338 = vadd.f32 %v251, %v337
      %339 = vmatmul.f32.gmra.mxu0 %v267
      %v340 = vpop.f32.mrf.mxu0
      %v341 = vadd.f32 %v251, %v340
      %342 = vmatmul.f32.gmra.mxu0 %v270
      %v343 = vpop.f32.mrf.mxu0
      %v344 = vadd.f32 %v251, %v343
      %345 = vmatmul.f32.gmra.mxu0 %v273
      %v346 = vpop.f32.mrf.mxu0
      %v347 = vadd.f32 %v251, %v346
      %348 = vmatmul.f32.gmra.mxu0 %v276
      %v349 = vpop.f32.mrf.mxu0
      %v350 = vadd.f32 %v251, %v349
      %351 = vmatmul.f32.gmra.mxu0 %v279
      %v352 = vpop.f32.mrf.mxu0
      %v353 = vadd.f32 %v251, %v352
      %354 = vmatmul.f32.gmra.mxu0 %v282
      %v355 = vpop.f32.mrf.mxu0
      %v356 = vadd.f32 %v251, %v355
      %357 = vmatmul.f32.gmra.mxu0 %v285
      %v358 = vpop.f32.mrf.mxu0
      %v359 = vadd.f32 %v251, %v358
      %360 = vmatmul.f32.gmra.mxu0 %v288
      %v361 = vpop.f32.mrf.mxu0
      %v362 = vadd.f32 %v251, %v361
      %363 = vmatmul.f32.gmra.mxu0 %v291
      %v364 = vpop.f32.mrf.mxu0
      %v365 = vadd.f32 %v251, %v364
      %366 = vmatmul.f32.gmra.mxu0 %v294
      %v367 = vpop.f32.mrf.mxu0
      %v368 = vadd.f32 %v251, %v367
      %369 = vmatmul.f32.gmra.mxu0 %v297
      %v370 = vpop.f32.mrf.mxu0
      %v371 = vadd.f32 %v251, %v370
      %372 = vmatmul.f32.gmra.mxu0 %v300
      %v373 = vpop.f32.mrf.mxu0
      %v374 = vadd.f32 %v251, %v373
      %375 = vmatmul.f32.gmra.mxu0 %v303
      %v376 = vpop.f32.mrf.mxu0
      %v377 = vadd.f32 %v251, %v376
      %378 = vmatmul.f32.gmra.mxu0 %v306
      %v379 = vpop.f32.mrf.mxu0
      %v380 = vadd.f32 %v251, %v379
      %381 = vmatmul.f32.gmra.mxu0 %v309
      %v382 = vpop.f32.mrf.mxu0
      %v383 = vadd.f32 %v251, %v382
      %384 = vdwg.mxu0
      %v385 = vmax.f32 %v329, 0.0
      %v386 = vmax.f32 %v332, 0.0
      %v387 = vmax.f32 %v335, 0.0
      %v388 = vmax.f32 %v338, 0.0
      %v389 = vmax.f32 %v341, 0.0
      %v390 = vmax.f32 %v344, 0.0
      %v391 = vmax.f32 %v347, 0.0
      %v392 = vmax.f32 %v350, 0.0
      %v393 = vmax.f32 %v353, 0.0
      %v394 = vmax.f32 %v356, 0.0
      %v395 = vmax.f32 %v359, 0.0
      %v396 = vmax.f32 %v362, 0.0
      %v397 = vmax.f32 %v365, 0.0
      %v398 = vmax.f32 %v368, 0.0
      %v399 = vmax.f32 %v371, 0.0
      %v400 = vmax.f32 %v374, 0.0
      %v401 = vmax.f32 %v377, 0.0
      %v402 = vmax.f32 %v380, 0.0
      %v403 = vmax.f32 %v383, 0.0
      %v404 = vld [vmem:[%s3] sm:$0xff]
      %v405 = vld [vmem:[%s3 + $0x8] sm:$0xff]
      %v406 = vld [vmem:[%s3 + $0x10] sm:$0xff]
      %v407 = vld [vmem:[%s3 + $0x18] sm:$0xff]
      %v408 = vld [vmem:[%s3 + $0x20] sm:$0xff]
      %v409 = vld [vmem:[%s3 + $0x28] sm:$0xff]
      %v410 = vld [vmem:[%s3 + $0x30] sm:$0xff]
      %v411 = vld [vmem:[%s3 + $0x38] sm:$0xff]
      %v412 = vld [vmem:[%s3 + $0x40] sm:$0xff]
      %v413 = vld [vmem:[%s3 + $0x48] sm:$0xff]
      %v414 = vld [vmem:[%s3 + $0x50] sm:$0xff]
      %v415 = vld [vmem:[%s3 + $0x58] sm:$0xff]
      %v416 = vld [vmem:[%s3 + $0x60] sm:$0xff]
      %v417 = vld [vmem:[%s3 + $0x68] sm:$0xff]
      %v418 = vld [vmem:[%s3 + $0x70] sm:$0xff]
      %v419 = vld [vmem:[%s3 + $0x78] sm:$0xff]
      %420 = vmatpush.msra.mxu0 %v419
      %421 = vmatpush.msra.mxu0 %v418
      %422 = vmatpush.msra.mxu0 %v417
      %423 = vmatpush.msra.mxu0 %v416
      %424 = vmatpush.msra.mxu0 %v415
      %425 = vmatpush.msra.mxu0 %v414
      %426 = vmatpush.msra.mxu0 %v413
      %427 = vmatpush.msra.mxu0 %v412
      %428 = vmatpush.msra.mxu0 %v411
      %429 = vmatpush.msra.mxu0 %v410
      %430 = vmatpush.msra.mxu0 %v409
      %431 = vmatpush.msra.mxu0 %v408
      %432 = vmatpush.msra.mxu0 %v407
      %433 = vmatpush.msra.mxu0 %v406
      %434 = vmatpush.msra.mxu0 %v405
      %435 = vmatpush.msra.mxu0 %v404
      %436 = vmatmul.f32.gmra.mxu0 %v385
      %v437 = vpop.f32.mrf.mxu0
      %v438 = vadd.f32 0.0, %v437
      %439 = vmatmul.f32.gmra.mxu0 %v386
      %v440 = vpop.f32.mrf.mxu0
      %v441 = vadd.f32 0.0, %v440
      %442 = vmatmul.f32.gmra.mxu0 %v387
      %v443 = vpop.f32.mrf.mxu0
      %v444 = vadd.f32 0.0, %v443
      %445 = vmatmul.f32.gmra.mxu0 %v388
      %v446 = vpop.f32.mrf.mxu0
      %v447 = vadd.f32 0.0, %v446
      %448 = vmatmul.f32.gmra.mxu0 %v389
      %v449 = vpop.f32.mrf.mxu0
      %v450 = vadd.f32 0.0, %v449
      %451 = vmatmul.f32.gmra.mxu0 %v390
      %v452 = vpop.f32.mrf.mxu0
      %v453 = vadd.f32 0.0, %v452
      %454 = vmatmul.f32.gmra.mxu0 %v391
      %v455 = vpop.f32.mrf.mxu0
      %v456 = vadd.f32 0.0, %v455
      %457 = vmatmul.f32.gmra.mxu0 %v392
      %v458 = vpop.f32.mrf.mxu0
      %v459 = vadd.f32 0.0, %v458
      %460 = vmatmul.f32.gmra.mxu0 %v393
      %v461 = vpop.f32.mrf.mxu0
      %v462 = vadd.f32 0.0, %v461
      %463 = vmatmul.f32.gmra.mxu0 %v394
      %v464 = vpop.f32.mrf.mxu0
      %v465 = vadd.f32 0.0, %v464
      %466 = vmatmul.f32.gmra.mxu0 %v395
      %v467 = vpop.f32.mrf.mxu0
      %v468 = vadd.f32 0.0, %v467
      %469 = vmatmul.f32.gmra.mxu0 %v396
      %v470 = vpop.f32.mrf.mxu0
      %v471 = vadd.f32 0.0, %v470
      %472 = vmatmul.f32.gmra.mxu0 %v397
      %v473 = vpop.f32.mrf.mxu0
      %v474 = vadd.f32 0.0, %v473
      %475 = vmatmul.f32.gmra.mxu0 %v398
      %v476 = vpop.f32.mrf.mxu0
      %v477 = vadd.f32 0.0, %v476
      %478 = vmatmul.f32.gmra.mxu0 %v399
      %v479 = vpop.f32.mrf.mxu0
      %v480 = vadd.f32 0.0, %v479
      %481 = vmatmul.f32.gmra.mxu0 %v400
      %v482 = vpop.f32.mrf.mxu0
      %v483 = vadd.f32 0.0, %v482
      %484 = vmatmul.f32.gmra.mxu0 %v401
      %v485 = vpop.f32.mrf.mxu0
      %v486 = vadd.f32 0.0, %v485
      %487 = vmatmul.f32.gmra.mxu0 %v402
      %v488 = vpop.f32.mrf.mxu0
      %v489 = vadd.f32 0.0, %v488
      %490 = vmatmul.f32.gmra.mxu0 %v403
      %v491 = vpop.f32.mrf.mxu0
      %v492 = vadd.f32 0.0, %v491
      %493 = vdwg.mxu0
      %v494 = vmax.f32 %v438, 0.0
      %v495 = vmax.f32 %v441, 0.0
      %v496 = vmax.f32 %v444, 0.0
      %v497 = vmax.f32 %v447, 0.0
      %v498 = vmax.f32 %v450, 0.0
      %v499 = vmax.f32 %v453, 0.0
      %v500 = vmax.f32 %v456, 0.0
      %v501 = vmax.f32 %v459, 0.0
      %v502 = vmax.f32 %v462, 0.0
      %v503 = vmax.f32 %v465, 0.0
      %v504 = vmax.f32 %v468, 0.0
      %v505 = vmax.f32 %v471, 0.0
      %v506 = vmax.f32 %v474, 0.0
      %v507 = vmax.f32 %v477, 0.0
      %v508 = vmax.f32 %v480, 0.0
      %v509 = vmax.f32 %v483, 0.0
      %v510 = vmax.f32 %v486, 0.0
      %v511 = vmax.f32 %v489, 0.0
      %v512 = vmax.f32 %v492, 0.0
      %v513 = vld [vmem:[%s4] sm:$0xff]
      %v514 = vld [vmem:[%s4 + $0x8] sm:$0xff]
      %v515 = vld [vmem:[%s4 + $0x10] sm:$0xff]
      %v516 = vld [vmem:[%s4 + $0x18] sm:$0xff]
      %v517 = vld [vmem:[%s4 + $0x20] sm:$0xff]
      %v518 = vld [vmem:[%s4 + $0x28] sm:$0xff]
      %v519 = vld [vmem:[%s4 + $0x30] sm:$0xff]
      %v520 = vld [vmem:[%s4 + $0x38] sm:$0xff]
      %v521 = vld [vmem:[%s4 + $0x40] sm:$0xff]
      %v522 = vld [vmem:[%s4 + $0x48] sm:$0xff]
      %v523 = vld [vmem:[%s4 + $0x50] sm:$0xff]
      %v524 = vld [vmem:[%s4 + $0x58] sm:$0xff]
      %v525 = vld [vmem:[%s4 + $0x60] sm:$0xff]
      %v526 = vld [vmem:[%s4 + $0x68] sm:$0xff]
      %v527 = vld [vmem:[%s4 + $0x70] sm:$0xff]
      %v528 = vld [vmem:[%s4 + $0x78] sm:$0xff]
      %529 = vmatpush.msra.mxu0 %v528
      %530 = vmatpush.msra.mxu0 %v527
      %531 = vmatpush.msra.mxu0 %v526
      %532 = vmatpush.msra.mxu0 %v525
      %533 = vmatpush.msra.mxu0 %v524
      %534 = vmatpush.msra.mxu0 %v523
      %535 = vmatpush.msra.mxu0 %v522
      %536 = vmatpush.msra.mxu0 %v521
      %537 = vmatpush.msra.mxu0 %v520
      %538 = vmatpush.msra.mxu0 %v519
      %539 = vmatpush.msra.mxu0 %v518
      %540 = vmatpush.msra.mxu0 %v517
      %541 = vmatpush.msra.mxu0 %v516
      %542 = vmatpush.msra.mxu0 %v515
      %543 = vmatpush.msra.mxu0 %v514
      %544 = vmatpush.msra.mxu0 %v513
      %545 = vmatmul.f32.gmra.mxu0 %v494
      %v546 = vpop.f32.mrf.mxu0
      %v547 = vadd.f32 0.0, %v546
      %548 = vmatmul.f32.gmra.mxu0 %v495
      %v549 = vpop.f32.mrf.mxu0
      %v550 = vadd.f32 0.0, %v549
      %551 = vmatmul.f32.gmra.mxu0 %v496
      %v552 = vpop.f32.mrf.mxu0
      %v553 = vadd.f32 0.0, %v552
      %554 = vmatmul.f32.gmra.mxu0 %v497
      %v555 = vpop.f32.mrf.mxu0
      %v556 = vadd.f32 0.0, %v555
      %557 = vmatmul.f32.gmra.mxu0 %v498
      %v558 = vpop.f32.mrf.mxu0
      %v559 = vadd.f32 0.0, %v558
      %560 = vmatmul.f32.gmra.mxu0 %v499
      %v561 = vpop.f32.mrf.mxu0
      %v562 = vadd.f32 0.0, %v561
      %563 = vmatmul.f32.gmra.mxu0 %v500
      %v564 = vpop.f32.mrf.mxu0
      %v565 = vadd.f32 0.0, %v564
      %566 = vmatmul.f32.gmra.mxu0 %v501
      %v567 = vpop.f32.mrf.mxu0
      %v568 = vadd.f32 0.0, %v567
      %569 = vmatmul.f32.gmra.mxu0 %v502
      %v570 = vpop.f32.mrf.mxu0
      %v571 = vadd.f32 0.0, %v570
      %572 = vmatmul.f32.gmra.mxu0 %v503
      %v573 = vpop.f32.mrf.mxu0
      %v574 = vadd.f32 0.0, %v573
      %575 = vmatmul.f32.gmra.mxu0 %v504
      %v576 = vpop.f32.mrf.mxu0
      %v577 = vadd.f32 0.0, %v576
      %578 = vmatmul.f32.gmra.mxu0 %v505
      %v579 = vpop.f32.mrf.mxu0
      %v580 = vadd.f32 0.0, %v579
      %581 = vmatmul.f32.gmra.mxu0 %v506
      %v582 = vpop.f32.mrf.mxu0
      %v583 = vadd.f32 0.0, %v582
      %584 = vmatmul.f32.gmra.mxu0 %v507
      %v585 = vpop.f32.mrf.mxu0
      %v586 = vadd.f32 0.0, %v585
      %587 = vmatmul.f32.gmra.mxu0 %v508
      %v588 = vpop.f32.mrf.mxu0
      %v589 = vadd.f32 0.0, %v588
      %590 = vmatmul.f32.gmra.mxu0 %v509
      %v591 = vpop.f32.mrf.mxu0
      %v592 = vadd.f32 0.0, %v591
      %593 = vmatmul.f32.gmra.mxu0 %v510
      %v594 = vpop.f32.mrf.mxu0
      %v595 = vadd.f32 0.0, %v594
      %596 = vmatmul.f32.gmra.mxu0 %v511
      %v597 = vpop.f32.mrf.mxu0
      %v598 = vadd.f32 0.0, %v597
      %599 = vmatmul.f32.gmra.mxu0 %v512
      %v600 = vpop.f32.mrf.mxu0
      %v601 = vadd.f32 0.0, %v600
      %602 = vdwg.mxu0
      %vm603 = vcmask 64512
      %604 = vst.msk [vmem:[%s226] sm:$0xff] %vm603, %v547
      %605 = vst.msk [vmem:[%s226 + $0x8] sm:$0xff] %vm603, %v550
      %606 = vst.msk [vmem:[%s226 + $0x10] sm:$0xff] %vm603, %v553
      %607 = vst.msk [vmem:[%s226 + $0x18] sm:$0xff] %vm603, %v556
      %608 = vst.msk [vmem:[%s226 + $0x20] sm:$0xff] %vm603, %v559
      %609 = vst.msk [vmem:[%s226 + $0x28] sm:$0xff] %vm603, %v562
      %610 = vst.msk [vmem:[%s226 + $0x30] sm:$0xff] %vm603, %v565
      %611 = vst.msk [vmem:[%s226 + $0x38] sm:$0xff] %vm603, %v568
      %612 = vst.msk [vmem:[%s226 + $0x40] sm:$0xff] %vm603, %v571
      %613 = vst.msk [vmem:[%s226 + $0x48] sm:$0xff] %vm603, %v574
      %614 = vst.msk [vmem:[%s226 + $0x50] sm:$0xff] %vm603, %v577
      %615 = vst.msk [vmem:[%s226 + $0x58] sm:$0xff] %vm603, %v580
      %616 = vst.msk [vmem:[%s226 + $0x60] sm:$0xff] %vm603, %v583
      %617 = vst.msk [vmem:[%s226 + $0x68] sm:$0xff] %vm603, %v586
      %618 = vst.msk [vmem:[%s226 + $0x70] sm:$0xff] %vm603, %v589
      %619 = vst.msk [vmem:[%s226 + $0x78] sm:$0xff] %vm603, %v592
      %620 = vst.msk [vmem:[%s226 + $0x80] sm:$0xff] %vm603, %v595
      %621 = vst.msk [vmem:[%s226 + $0x88] sm:$0xff] %vm603, %v598
      %622 = vst.msk [vmem:[%s226 + $0x90] sm:$0xff] %vm603, %v601
      %s623 = smul.u32 19, %s16
      %p624 = scmp.lt.s32.totalorder %s623, 37
      %s625 = scalar_select %p624, %s623, 37
      %s626 = smul.addr %s625, 8
      %s627 = scalar_lea.vmem %s5, %s626
      // Predicated region
      $region41: #{tpu_custom_call.1} parent=39 // pred_check
        %p628 = pneg %p144
      $region42: #{tpu_custom_call.1} parent=39 // pred_check_branch
        %630 = sbr.rel (%p628) target = $region44
      $region43: #{tpu_custom_call.1} parent=39 // pred_region
        %s631 = smul.u32 19, %s16
      $region44: #{tpu_custom_call.1} parent=39 // pred_fallthru
        _
    $region40: #{tpu_custom_call.1} parent=5 // pred_fallthru
      _
    %p632 = scmp.le.s32.totalorder 2, %s11
    // Predicated region
    $region45: #{tpu_custom_call.1} parent=5 // pred_check
      %p633 = pneg %p632
    $region46: #{tpu_custom_call.1} parent=5 // pred_check_branch
      %635 = sbr.rel (%p633) target = $region48
    $region47: #{tpu_custom_call.1} parent=5 // pred_region
      %s636 = ssub.s32 %s11, 2
      // Predicated region
      $region49: #{tpu_custom_call.1} parent=47 // pred_check
        %p637 = pneg %p150
      $region50: #{tpu_custom_call.1} parent=47 // pred_check_branch
        %639 = sbr.rel (%p637) target = $region52
      $region51: #{tpu_custom_call.1} parent=47 // pred_region
        %s640 = smul.u32 19, %s17
        %p641 = scmp.lt.s32.totalorder %s640, 37
        %s642 = scalar_select %p641, %s640, 37
        %s643 = smul.addr %s642, 8
        %s644 = scalar_lea.vmem %s5, %s643
      $region52: #{tpu_custom_call.1} parent=47 // pred_fallthru
        _
    $region48: #{tpu_custom_call.1} parent=5 // pred_fallthru
      _
  $region6: #{tpu_custom_call.1} parent=0 // loop_footer
    %s15 = sadd.s32 1, %s11
  $region7: #{tpu_custom_call.1} parent=0 // loop_footer_branch
    %10 = sbr.rel target = $region3
  $region8: #{tpu_custom_call.1} parent=0 // loop_exit
    _

</llo_original>
